<compile_context>
chip_gen: v7x
topology: tpu7x:2x2x1
jax: 0.10.0
libtpu: 0.0.40
codegen_flags: <defaults>
</compile_context>

<pallas_src>
import functools

import jax
import jax.numpy as jnp
from jax.experimental import pallas as pl
from jax.experimental.pallas import tpu as pltpu


def _round_up(x: int, m: int) -> int:
    return ((x + m - 1) // m) * m


def _default_block_b() -> int:
    """Chip-aware default batch tile: 128 on v5e, 256 on v6e/v7x."""
    try:
        kind = jax.devices()[0].device_kind.lower()
        if "v5 lite" in kind or "v5e" in kind or "v5litepod" in kind:
            return 128
    except Exception:
        pass
    return 256


# ---------------------------------------------------------------------------
# One-time parameter preparation (hoisted out of the per-call forward).
# ---------------------------------------------------------------------------
def prepare_params(w1, b1, w2, b2):
    """Cast weights to bf16 and pad the fc2 output width to 128 lanes.

    Args:
      w1: (D, H) f32 fc1 weight (in x out layout).
      b1: (1, H) or (H,) f32 fc1 bias.
      w2: (H, C) f32 fc2 weight (in x out layout).
      b2: (1, C) or (C,) f32 fc2 bias.

    Returns:
      (w1_bf16, b1_f32, w2_padded_bf16, b2_padded_f32), done once at init time.
    """
    D, H = w1.shape
    C = w2.shape[1]
    C_pad = _round_up(max(C, 1), 128)  # lane-dense output stores

    w1_b = w1.astype(jnp.bfloat16)
    b1_f = jnp.reshape(b1, (1, H)).astype(jnp.float32)
    w2_p = jnp.zeros((H, C_pad), jnp.bfloat16).at[:, :C].set(w2.astype(jnp.bfloat16))
    b2_p = jnp.zeros((1, C_pad), jnp.float32).at[:, :C].set(
        jnp.reshape(b2, (1, C)).astype(jnp.float32))
    return w1_b, b1_f, w2_p, b2_p


# ---------------------------------------------------------------------------
# Kernel body.
# ---------------------------------------------------------------------------
def mlp_kernel(x_ref, w1_ref, b1_ref, w2_ref, b2_ref, o_ref):
    # Cast x to bf16 in-kernel (VPU, hidden under the MXU) -- avoids a separate
    # HBM round trip for a bf16 copy of x in the wrapper.
    x = x_ref[...].astype(jnp.bfloat16)
    # fc1: (TB, D)bf16 @ (D, H)bf16 -> f32 accumulation on the MXU.
    h = jnp.dot(x, w1_ref[...], preferred_element_type=jnp.float32)
    # Bias add + ReLU in f32 (VPU).
    h = jnp.maximum(h + b1_ref[...], 0.0)
    # Dropout(p=0.5) in eval/inference mode is the identity.
    # TODO(synk): training-mode dropout (random mask + 1/(1-p) scaling) omitted;
    #             inference semantics are reproduced exactly.
    # fc2: (TB, H)bf16 @ (H, Cpad)bf16 -> f32 accumulation.
    out = jnp.dot(h.astype(jnp.bfloat16), w2_ref[...],
                  preferred_element_type=jnp.float32)
    o_ref[...] = out + b2_ref[...]


# ---------------------------------------------------------------------------
# Forward pass (weights are already prepared / padded).
# ---------------------------------------------------------------------------
@functools.partial(jax.jit, static_argnames=("num_classes", "block_b"))
def neural_network_forward(x, w1_b, b1_f, w2_p, b2_p, *, num_classes: int,
                           block_b: int = 128):
    """Forward pass of NeuralNetwork.

    Args:
      x:    (B, D)      float32 inputs (cast to bf16 inside the kernel).
      w1_b: (D, H)      bfloat16 fc1 weight (from prepare_params).
      b1_f: (1, H)      float32 fc1 bias.
      w2_p: (H, C_pad)  bfloat16 fc2 weight, lane-padded to 128.
      b2_p: (1, C_pad)  float32 fc2 bias, lane-padded.
      num_classes:      real number of output classes C (static).
      block_b:          max batch tile (static; chip-aware default chosen by caller).

    Returns:
      (B, num_classes) float32 logits.
    """
    B, D = x.shape
    H = w1_b.shape[1]
    C_pad = w2_p.shape[1]

    # Pad the batch only to the sublane granule (16 covers both the bf16 x tile
    # and the f32 output tile), then pick an adaptive tile size.
    B_min = _round_up(max(B, 1), 16)
    TB = min(block_b, B_min)
    B_pad = _round_up(B_min, TB)

    if B_pad != B:
        x = jnp.pad(x, ((0, B_pad - B), (0, 0)))

    grid = (B_pad // TB,)

    cost = pl.CostEstimate(
        flops=2 * B_pad * (D * H + H * C_pad),
        transcendentals=0,
        bytes_accessed=(B_pad * D * 4            # x (f32 in)
                        + w1_b.size * 2          # w1 (bf16)
                        + w2_p.size * 2          # w2 (bf16)
                        + b1_f.size * 4 + b2_p.size * 4
                        + B_pad * C_pad * 4),    # out (f32)
    )

    # NOTE: at these dims resident weights + double-buffered x/out tiles fit
    # easily in the default scoped VMEM on all of v5e/v6e/v7x.
    # TODO(synk): if H or TB grow (esp. on v7x's 64 MiB VMEM), set
    #             vmem_limit_bytes and consider Buffered(1) on the weight specs.
    out_padded = pl.pallas_call(
        mlp_kernel,
        out_shape=jax.ShapeDtypeStruct((B_pad, C_pad), jnp.float32),
        grid=grid,
        in_specs=[
            pl.BlockSpec((TB, D), lambda i: (i, 0)),      # x: streamed per tile
            pl.BlockSpec((D, H), lambda i: (0, 0)),       # w1: resident
            pl.BlockSpec((1, H), lambda i: (0, 0)),       # b1: resident
            pl.BlockSpec((H, C_pad), lambda i: (0, 0)),   # w2: resident
            pl.BlockSpec((1, C_pad), lambda i: (0, 0)),   # b2: resident
        ],
        out_specs=pl.BlockSpec((TB, C_pad), lambda i: (i, 0)),
        compiler_params=pltpu.CompilerParams(
            dimension_semantics=("parallel",),
        ),
        cost_estimate=cost,
    )(x, w1_b, b1_f, w2_p, b2_p)

    # Slice back to the module's (B, C) output contract.
    return out_padded[:B, :num_classes]


def init_params(key, input_dim, hidden_dim, num_classes):
    """PyTorch-style Linear init: U(-1/sqrt(fan_in), 1/sqrt(fan_in))."""
    k1, k2, k3, k4 = jax.random.split(key, 4)
    bound1 = 1.0 / jnp.sqrt(input_dim)
    w1 = jax.random.uniform(k1, (input_dim, hidden_dim), jnp.float32,
                            minval=-bound1, maxval=bound1)
    b1 = jax.random.uniform(k2, (1, hidden_dim), jnp.float32,
                            minval=-bound1, maxval=bound1)
    bound2 = 1.0 / jnp.sqrt(hidden_dim)
    w2 = jax.random.uniform(k3, (hidden_dim, num_classes), jnp.float32,
                            minval=-bound2, maxval=bound2)
    b2 = jax.random.uniform(k4, (1, num_classes), jnp.float32,
                            minval=-bound2, maxval=bound2)
    return w1, b1, w2, b2


if __name__ == "__main__":
    key = jax.random.PRNGKey(0)
    batch, input_dim, hidden_dim, num_classes = 8, 32, 512, 16

    kx, kp = jax.random.split(key)
    x = jax.random.normal(kx, (batch, input_dim), jnp.float32)
    w1, b1, w2, b2 = init_params(kp, input_dim, hidden_dim, num_classes)

    # One-time parameter prep (hoisted out of the per-call forward).
    params = prepare_params(w1, b1, w2, b2)
    params = jax.block_until_ready(params)

    block_b = _default_block_b()
    out = neural_network_forward(x, *params, num_classes=num_classes,
                                 block_b=block_b)
    out = jax.block_until_ready(out)
    assert out.shape == (batch, num_classes)

    # Reference 1: same bf16-operand / f32-accumulate path in plain JAX.
    xb, w1b, w2b = (a.astype(jnp.bfloat16) for a in (x, w1, w2))
    ref_h = jnp.maximum(
        jnp.dot(xb, w1b, preferred_element_type=jnp.float32) + b1, 0.0)
    ref_bf16 = jnp.dot(ref_h.astype(jnp.bfloat16), w2b,
                       preferred_element_type=jnp.float32) + b2
    assert jnp.allclose(out, ref_bf16, atol=1e-3, rtol=1e-3), \
        f"max abs err vs bf16 ref: {jnp.max(jnp.abs(out - ref_bf16))}"

    # Reference 2: full f32 math (loose tolerance covers bf16 operand rounding).
    ref_f32 = jnp.maximum(x @ w1 + b1, 0.0) @ w2 + b2
    assert jnp.allclose(out, ref_f32, atol=5e-2, rtol=5e-2), \
        f"max abs err vs f32 ref: {jnp.max(jnp.abs(out - ref_f32))}"

    print("KERNEL_OK")
</pallas_src>

<mosaic_0001>
module attributes {stable_mosaic.version = 11 : i64} {
  func.func @mlp_kernel(%arg0: i32, %arg1: memref<16x32xf32, #tpu.memory_space<vmem>>, %arg2: memref<32x512xbf16, #tpu.memory_space<vmem>>, %arg3: memref<1x512xf32, #tpu.memory_space<vmem>>, %arg4: memref<512x128xbf16, #tpu.memory_space<vmem>>, %arg5: memref<1x128xf32, #tpu.memory_space<vmem>>, %arg6: memref<16x128xf32, #tpu.memory_space<vmem>>) attributes {dimension_semantics = [#tpu.dimension_semantics<parallel>], iteration_bounds = array<i64: 1>, scalar_prefetch = 0 : i64, scratch_operands = 0 : i64, tpu.core_type = #tpu.core_type<tc>, window_params = [{transform_indices = @transform_0, window_bounds = array<i64: 16, 32>}, {pipeline_mode = #tpu.pipeline_mode<synchronous>, transform_indices = @transform_1, window_bounds = array<i64: 32, 512>}, {pipeline_mode = #tpu.pipeline_mode<synchronous>, transform_indices = @transform_2, window_bounds = array<i64: 1, 512>}, {pipeline_mode = #tpu.pipeline_mode<synchronous>, transform_indices = @transform_3, window_bounds = array<i64: 512, 128>}, {pipeline_mode = #tpu.pipeline_mode<synchronous>, transform_indices = @transform_4, window_bounds = array<i64: 1, 128>}, {transform_indices = @transform_5, window_bounds = array<i64: 16, 128>}]} {
    %c0 = arith.constant 0 : index
    %c0_0 = arith.constant 0 : index
    %0 = vector.load %arg1[%c0, %c0_0] : memref<16x32xf32, #tpu.memory_space<vmem>>, vector<16x32xf32>
    %1 = arith.truncf %0 : vector<16x32xf32> to vector<16x32xbf16>
    %c0_1 = arith.constant 0 : index
    %c0_2 = arith.constant 0 : index
    %2 = vector.load %arg2[%c0_1, %c0_2] : memref<32x512xbf16, #tpu.memory_space<vmem>>, vector<32x512xbf16>
    %cst = arith.constant dense<0.000000e+00> : vector<16x512xf32>
    %3 = tpu.matmul %1, %2, %cst {dimension_numbers = #tpu.dot_dimension_numbers<[1], [0], [0], [1], [0, 0, 1, 1], [], []>} : vector<16x32xbf16>, vector<32x512xbf16>, vector<16x512xf32> -> vector<16x512xf32>
    %c0_3 = arith.constant 0 : index
    %c0_4 = arith.constant 0 : index
    %4 = vector.load %arg3[%c0_3, %c0_4] : memref<1x512xf32, #tpu.memory_space<vmem>>, vector<1x512xf32>
    %5 = vector.broadcast %4 : vector<1x512xf32> to vector<16x512xf32>
    %6 = arith.addf %3, %5 : vector<16x512xf32>
    %cst_5 = arith.constant 0.000000e+00 : f32
    %7 = vector.broadcast %cst_5 : f32 to vector<16x512xf32>
    %8 = arith.maximumf %6, %7 : vector<16x512xf32>
    %9 = arith.truncf %8 : vector<16x512xf32> to vector<16x512xbf16>
    %c0_6 = arith.constant 0 : index
    %c0_7 = arith.constant 0 : index
    %10 = vector.load %arg4[%c0_6, %c0_7] : memref<512x128xbf16, #tpu.memory_space<vmem>>, vector<512x128xbf16>
    %cst_8 = arith.constant dense<0.000000e+00> : vector<16x128xf32>
    %11 = tpu.matmul %9, %10, %cst_8 {dimension_numbers = #tpu.dot_dimension_numbers<[1], [0], [0], [1], [0, 0, 1, 1], [], []>} : vector<16x512xbf16>, vector<512x128xbf16>, vector<16x128xf32> -> vector<16x128xf32>
    %c0_9 = arith.constant 0 : index
    %c0_10 = arith.constant 0 : index
    %12 = vector.load %arg5[%c0_9, %c0_10] : memref<1x128xf32, #tpu.memory_space<vmem>>, vector<1x128xf32>
    %13 = vector.broadcast %12 : vector<1x128xf32> to vector<16x128xf32>
    %14 = arith.addf %11, %13 : vector<16x128xf32>
    %c0_11 = arith.constant 0 : index
    %c0_12 = arith.constant 0 : index
    %15 = vector.load %arg6[%c0_11, %c0_12] : memref<16x128xf32, #tpu.memory_space<vmem>>, vector<16x128xf32>
    tpu.vector_store %arg6[%c0_11, %c0_12], %14 {strides = array<i32>} : memref<16x128xf32, #tpu.memory_space<vmem>>, vector<16x128xf32>,
    return
  }
  func.func @transform_0(%arg0: i32) -> (i32, i32) {
    %c0_i32 = arith.constant 0 : i32
    %c0_i32_0 = arith.constant 0 : i32
    return %arg0, %c0_i32 : i32, i32
  }
  func.func @transform_1(%arg0: i32) -> (i32, i32) {
    %c0_i32 = arith.constant 0 : i32
    %c0_i32_0 = arith.constant 0 : i32
    %c0_i32_1 = arith.constant 0 : i32
    return %c0_i32, %c0_i32_0 : i32, i32
  }
  func.func @transform_2(%arg0: i32) -> (i32, i32) {
    %c0_i32 = arith.constant 0 : i32
    %c0_i32_0 = arith.constant 0 : i32
    %c0_i32_1 = arith.constant 0 : i32
    return %c0_i32, %c0_i32_0 : i32, i32
  }
  func.func @transform_3(%arg0: i32) -> (i32, i32) {
    %c0_i32 = arith.constant 0 : i32
    %c0_i32_0 = arith.constant 0 : i32
    %c0_i32_1 = arith.constant 0 : i32
    return %c0_i32, %c0_i32_0 : i32, i32
  }
  func.func @transform_4(%arg0: i32) -> (i32, i32) {
    %c0_i32 = arith.constant 0 : i32
    %c0_i32_0 = arith.constant 0 : i32
    %c0_i32_1 = arith.constant 0 : i32
    return %c0_i32, %c0_i32_0 : i32, i32
  }
  func.func @transform_5(%arg0: i32) -> (i32, i32) {
    %c0_i32 = arith.constant 0 : i32
    %c0_i32_0 = arith.constant 0 : i32
    return %arg0, %c0_i32 : i32, i32
  }
}

</mosaic_0001>

<llo_original>
// kernel: neural_network_forward.1
$region0: #{neural_network_forward.1}
  #allocation0 [shape = 'u32[]', space=smem, size = 0x4, offset = 0x4, fixed_abs, tag = 'smem constant byte address 0x4 - core index']
  #allocation1 [shape = 'u32[144,128]{1,0:T(1,128)}', space=vmem, size = 0x12000, scoped, tag = 'internal scratch']
  %s0 = inlined_call_operand.vmem [shape: f32[16,32], index: 0, kind: input, shape index: {}]
  %s1 = inlined_call_operand.hbm [shape: bf16[32,512], index: 1, kind: input, shape index: {}]
  %s2 = inlined_call_operand.vmem [shape: f32[1,512], index: 2, kind: input, shape index: {}]
  %s3 = inlined_call_operand.hbm [shape: bf16[512,128], index: 3, kind: input, shape index: {}]
  %s4 = inlined_call_operand.vmem [shape: f32[1,128], index: 4, kind: input, shape index: {}]
  %s5 = inlined_call_operand.vmem [shape: f32[16,128], index: 5, kind: output, shape index: {}]
  %s6 = sld [smem:[#allocation0]]
  $region38: #{neural_network_forward.1} parent=0
    _
  %s8 = ssub.s32 1, %s6
  %s9 = scalar_select 0, %s8, %s6
  $region1: #{neural_network_forward.1} parent=0
    #allocation2 [shape = 'u8[32768]{0}', space=vmem, size = 0x8000, scoped, tag = 'input window, operand 1, single buffered']
    #allocation3 [shape = 's32[1]{0}', space=sflag, size = 0x4, scoped, tag = 'scoped memory for neural_network_forward.1']
    #allocation4 [shape = 'u8[131072]{0}', space=vmem, size = 0x20000, scoped, tag = 'input window, operand 3, single buffered']
    #allocation5 [shape = 's32[1]{0}', space=sflag, size = 0x4, scoped, tag = 'scoped memory for neural_network_forward.1']
    %10 = vsyncpa [#allocation3], 0
    %11 = vsyncpa [#allocation5], 0
    // Predicated region
    $region2: #{neural_network_forward.1} parent=1 // pred_check
      _
    $region3: #{neural_network_forward.1} parent=1 // pred_check_branch
      %13 = sbr.rel (0) target = $region5
    $region4: #{neural_network_forward.1} parent=1 // pred_region
      _
    $region5: #{neural_network_forward.1} parent=1 // pred_fallthru
      _
    // Predicated region
    $region6: #{neural_network_forward.1} parent=1 // pred_check
      _
    $region7: #{neural_network_forward.1} parent=1 // pred_check_branch
      %15 = sbr.rel (0) target = $region9
    $region8: #{neural_network_forward.1} parent=1 // pred_region
      %s17 = ssub.s32 1024, 1024
      %18 = vsyncadd [#allocation3], %s17
      %s19 = sshll.u32 [#allocation2], 4
      %s20 = int_to_ptr.vmem [resolvable:$true] %s19
      %25 = dma.hbm_to_vmem [thread:$0]  %s1, 1024, %s20, [#allocation3], 256, 256, 16
    $region9: #{neural_network_forward.1} parent=1 // pred_fallthru
      _
    // Predicated region
    $region10: #{neural_network_forward.1} parent=1 // pred_check
      _
    $region11: #{neural_network_forward.1} parent=1 // pred_check_branch
      %27 = sbr.rel (0) target = $region13
    $region12: #{neural_network_forward.1} parent=1 // pred_region
      _
    $region13: #{neural_network_forward.1} parent=1 // pred_fallthru
      _
    // Predicated region
    $region14: #{neural_network_forward.1} parent=1 // pred_check
      _
    $region15: #{neural_network_forward.1} parent=1 // pred_check_branch
      %29 = sbr.rel (0) target = $region17
    $region16: #{neural_network_forward.1} parent=1 // pred_region
      %s31 = ssub.s32 4096, 4096
      %32 = vsyncadd [#allocation5], %s31
      %s33 = sshll.u32 [#allocation4], 4
      %s34 = int_to_ptr.vmem [resolvable:$true] %s33
      %39 = dma.hbm_to_vmem [thread:$0]  %s3, 4096, %s34, [#allocation5], 64, 64, 4
    $region17: #{neural_network_forward.1} parent=1 // pred_fallthru
      _
    // Predicated region
    $region18: #{neural_network_forward.1} parent=1 // pred_check
      _
    $region19: #{neural_network_forward.1} parent=1 // pred_check_branch
      %41 = sbr.rel (0) target = $region21
    $region20: #{neural_network_forward.1} parent=1 // pred_region
      _
    $region21: #{neural_network_forward.1} parent=1 // pred_fallthru
      _
    // Predicated region
    $region22: #{neural_network_forward.1} parent=1 // pred_check
      _
    $region23: #{neural_network_forward.1} parent=1 // pred_check_branch
      %43 = sbr.rel (0) target = $region25
    $region24: #{neural_network_forward.1} parent=1 // pred_region
      %44 = dma.done [#allocation3], 1024
    $region25: #{neural_network_forward.1} parent=1 // pred_fallthru
      _
    // Predicated region
    $region26: #{neural_network_forward.1} parent=1 // pred_check
      _
    $region27: #{neural_network_forward.1} parent=1 // pred_check_branch
      %46 = sbr.rel (0) target = $region29
    $region28: #{neural_network_forward.1} parent=1 // pred_region
      %47 = dma.done [#allocation5], 4096
    $region29: #{neural_network_forward.1} parent=1 // pred_fallthru
      _
    %v49 = vld [vmem:[%s0] sm:$0xff]
    %v50 = vld [vmem:[%s0 + $0x8] sm:$0xff]
    %v51 = vpack.c.bf16 %v50, %v49
    %v52 = vld [vmem:[#allocation2] sm:$0xff]
    %v53 = vld [vmem:[#allocation2 + $0x8] sm:$0xff]
    %v54 = vld [vmem:[#allocation2 + $0x10] sm:$0xff]
    %v55 = vld [vmem:[#allocation2 + $0x18] sm:$0xff]
    %v56 = vld [vmem:[#allocation2 + $0x20] sm:$0xff]
    %v57 = vld [vmem:[#allocation2 + $0x28] sm:$0xff]
    %v58 = vld [vmem:[#allocation2 + $0x30] sm:$0xff]
    %v59 = vld [vmem:[#allocation2 + $0x38] sm:$0xff]
    %v60 = vld [vmem:[%s2] sm:$0xf]
    %v62 = vlaneseq
    %v63 = vshrl.u32 %v62, 7
    %v64 = vsub.s32 0, %v63
    %v65 = vrot.slane %v60, %v64
    %v66 = vlaneseq
    %v67 = vshrl.u32 %v66, 7
    %v68 = vsub.s32 1, %v67
    %v69 = vrot.slane %v60, %v68
    %v70 = vlaneseq
    %v71 = vshrl.u32 %v70, 7
    %v72 = vsub.s32 2, %v71
    %v73 = vrot.slane %v60, %v72
    %v74 = vlaneseq
    %v75 = vshrl.u32 %v74, 7
    %v76 = vsub.s32 3, %v75
    %v77 = vrot.slane %v60, %v76
    %v90 = vunpack.c.l.b16 %v52
    %v91 = vunpack.c.h.b16 %v52
    %v92 = vunpack.c.l.b16 %v53
    %v93 = vunpack.c.h.b16 %v53
    %v94 = vunpack.c.l.b16 %v54
    %v95 = vunpack.c.h.b16 %v54
    %v96 = vunpack.c.l.b16 %v55
    %v97 = vunpack.c.h.b16 %v55
    %v98 = vunpack.c.l.b16 %v56
    %v99 = vunpack.c.h.b16 %v56
    %v100 = vunpack.c.l.b16 %v57
    %v101 = vunpack.c.h.b16 %v57
    %v102 = vunpack.c.l.b16 %v58
    %v103 = vunpack.c.h.b16 %v58
    %v104 = vunpack.c.l.b16 %v59
    %v105 = vunpack.c.h.b16 %v59
    %v106 = vpack.c.b16 %v94, %v90
    %v107 = vpack.c.b16 %v95, %v91
    %v108 = vpack.c.b16 %v96, %v92
    %v109 = vpack.c.b16 %v97, %v93
    %v110 = vpack.c.b16 %v102, %v98
    %v111 = vpack.c.b16 %v103, %v99
    %v112 = vpack.c.b16 %v104, %v100
    %v113 = vpack.c.b16 %v105, %v101
    %vm122 = vcmask 261120
    %v124 = vsel %vm122, %v51, 0
    %126 = vmatprep.subr.bf16.mxu0 %v107
    %127 = vmatpush1.bf16.msra.mxu0 %v106
    %128 = vmatprep.subr.bf16.mxu0 %v111
    %129 = vmatpush1.bf16.msra.mxu0 %v110
    %130 = vmatprep.subr.bf16.mxu0 0
    %131 = vmatpush1.bf16.msra.mxu0 0
    %132 = vmatprep.subr.bf16.mxu0 0
    %133 = vmatpush1.bf16.msra.mxu0 0
    %134 = vmatprep.subr.bf16.mxu0 0
    %135 = vmatpush1.bf16.msra.mxu0 0
    %136 = vmatprep.subr.bf16.mxu0 0
    %137 = vmatpush1.bf16.msra.mxu0 0
    %138 = vmatprep.subr.bf16.mxu0 0
    %139 = vmatpush1.bf16.msra.mxu0 0
    %140 = vmatprep.subr.bf16.mxu0 0
    %141 = vmatpush1.bf16.msra.mxu0 0
    %142 = vmatprep.subr.bf16.mxu0 0
    %143 = vmatpush1.bf16.msra.mxu0 0
    %144 = vmatprep.subr.bf16.mxu0 0
    %145 = vmatpush1.bf16.msra.mxu0 0
    %146 = vmatprep.subr.bf16.mxu0 0
    %147 = vmatpush1.bf16.msra.mxu0 0
    %148 = vmatprep.subr.bf16.mxu0 0
    %149 = vmatpush1.bf16.msra.mxu0 0
    %150 = vmatprep.subr.bf16.mxu0 0
    %151 = vmatpush1.bf16.msra.mxu0 0
    %152 = vmatprep.subr.bf16.mxu0 0
    %153 = vmatpush1.bf16.msra.mxu0 0
    %154 = vmatprep.subr.bf16.mxu0 0
    %155 = vmatpush1.bf16.msra.mxu0 0
    %156 = vmatprep.subr.bf16.mxu0 0
    %157 = vmatpush1.bf16.msra.mxu0 0
    %158 = vmatprep.mubr.bf16.mxu0 0
    %159 = vmatmul.mubr.bf16.gmra.mrb[0].mxu0 %v124
    %v160 = vpop.f32.mrb[0].mxu0
    %v161 = vadd.f32 %v65, %v160
    %v162 = vpop.f32.mrb[0].mxu0
    %v163 = vadd.f32 %v69, %v162
    %v164 = vpop.f32.mrb[0].mxu0
    %v165 = vadd.f32 %v65, %v164
    %v166 = vpop.f32.mrb[0].mxu0
    %v167 = vadd.f32 %v69, %v166
    %168 = vdwg.mxu0
    %169 = vmatprep.subr.bf16.mxu0 %v109
    %170 = vmatpush1.bf16.msra.mxu0 %v108
    %171 = vmatprep.subr.bf16.mxu0 %v113
    %172 = vmatpush1.bf16.msra.mxu0 %v112
    %173 = vmatprep.subr.bf16.mxu0 0
    %174 = vmatpush1.bf16.msra.mxu0 0
    %175 = vmatprep.subr.bf16.mxu0 0
    %176 = vmatpush1.bf16.msra.mxu0 0
    %177 = vmatprep.subr.bf16.mxu0 0
    %178 = vmatpush1.bf16.msra.mxu0 0
    %179 = vmatprep.subr.bf16.mxu0 0
    %180 = vmatpush1.bf16.msra.mxu0 0
    %181 = vmatprep.subr.bf16.mxu0 0
    %182 = vmatpush1.bf16.msra.mxu0 0
    %183 = vmatprep.subr.bf16.mxu0 0
    %184 = vmatpush1.bf16.msra.mxu0 0
    %185 = vmatprep.subr.bf16.mxu0 0
    %186 = vmatpush1.bf16.msra.mxu0 0
    %187 = vmatprep.subr.bf16.mxu0 0
    %188 = vmatpush1.bf16.msra.mxu0 0
    %189 = vmatprep.subr.bf16.mxu0 0
    %190 = vmatpush1.bf16.msra.mxu0 0
    %191 = vmatprep.subr.bf16.mxu0 0
    %192 = vmatpush1.bf16.msra.mxu0 0
    %193 = vmatprep.subr.bf16.mxu0 0
    %194 = vmatpush1.bf16.msra.mxu0 0
    %195 = vmatprep.subr.bf16.mxu0 0
    %196 = vmatpush1.bf16.msra.mxu0 0
    %197 = vmatprep.subr.bf16.mxu0 0
    %198 = vmatpush1.bf16.msra.mxu0 0
    %199 = vmatprep.subr.bf16.mxu0 0
    %200 = vmatpush1.bf16.msra.mxu0 0
    %201 = vmatprep.mubr.bf16.mxu0 0
    %202 = vmatmul.mubr.bf16.gmra.mrb[0].mxu0 %v124
    %v203 = vpop.f32.mrb[0].mxu0
    %v204 = vadd.f32 %v73, %v203
    %v205 = vpop.f32.mrb[0].mxu0
    %v206 = vadd.f32 %v77, %v205
    %v207 = vpop.f32.mrb[0].mxu0
    %v208 = vadd.f32 %v73, %v207
    %v209 = vpop.f32.mrb[0].mxu0
    %v210 = vadd.f32 %v77, %v209
    %211 = vdwg.mxu0
    %v212 = vmax.f32 %v161, 0.0
    %v213 = vmax.f32 %v163, 0.0
    %v214 = vmax.f32 %v204, 0.0
    %v215 = vmax.f32 %v206, 0.0
    %v216 = vmax.f32 %v165, 0.0
    %v217 = vmax.f32 %v167, 0.0
    %v218 = vmax.f32 %v208, 0.0
    %v219 = vmax.f32 %v210, 0.0
    %v220 = vpack.c.bf16 %v216, %v212
    %v221 = vpack.c.bf16 %v217, %v213
    %v222 = vpack.c.bf16 %v218, %v214
    %v223 = vpack.c.bf16 %v219, %v215
    %v224 = vld [vmem:[#allocation4] sm:$0xf]
    %v225 = vld [vmem:[#allocation4 + $0x4] sm:$0xf]
    %v226 = vld [vmem:[#allocation4 + $0x8] sm:$0xf]
    %v227 = vld [vmem:[#allocation4 + $0xc] sm:$0xf]
    %v228 = vld [vmem:[#allocation4 + $0x10] sm:$0xf]
    %v229 = vld [vmem:[#allocation4 + $0x14] sm:$0xf]
    %v230 = vld [vmem:[#allocation4 + $0x18] sm:$0xf]
    %v231 = vld [vmem:[#allocation4 + $0x1c] sm:$0xf]
    %v232 = vld [vmem:[#allocation4 + $0x20] sm:$0xf]
    %v233 = vld [vmem:[#allocation4 + $0x24] sm:$0xf]
    %v234 = vld [vmem:[#allocation4 + $0x28] sm:$0xf]
    %v235 = vld [vmem:[#allocation4 + $0x2c] sm:$0xf]
    %v236 = vld [vmem:[#allocation4 + $0x30] sm:$0xf]
    %v237 = vld [vmem:[#allocation4 + $0x34] sm:$0xf]
    %v238 = vld [vmem:[#allocation4 + $0x38] sm:$0xf]
    %v239 = vld [vmem:[#allocation4 + $0x3c] sm:$0xf]
    %v240 = vld [vmem:[#allocation4 + $0x40] sm:$0xf]
    %v241 = vld [vmem:[#allocation4 + $0x44] sm:$0xf]
    %v242 = vld [vmem:[#allocation4 + $0x48] sm:$0xf]
    %v243 = vld [vmem:[#allocation4 + $0x4c] sm:$0xf]
    %v244 = vld [vmem:[#allocation4 + $0x50] sm:$0xf]
    %v245 = vld [vmem:[#allocation4 + $0x54] sm:$0xf]
    %v246 = vld [vmem:[#allocation4 + $0x58] sm:$0xf]
    %v247 = vld [vmem:[#allocation4 + $0x5c] sm:$0xf]
    %v248 = vld [vmem:[#allocation4 + $0x60] sm:$0xf]
    %v249 = vld [vmem:[#allocation4 + $0x64] sm:$0xf]
    %v250 = vld [vmem:[#allocation4 + $0x68] sm:$0xf]
    %v251 = vld [vmem:[#allocation4 + $0x6c] sm:$0xf]
    %v252 = vld [vmem:[#allocation4 + $0x70] sm:$0xf]
    %v253 = vld [vmem:[#allocation4 + $0x74] sm:$0xf]
    %v254 = vld [vmem:[#allocation4 + $0x78] sm:$0xf]
    %v255 = vld [vmem:[#allocation4 + $0x7c] sm:$0xf]
    %v256 = vld [vmem:[#allocation4 + $0x80] sm:$0xf]
    %v257 = vld [vmem:[#allocation4 + $0x84] sm:$0xf]
    %v258 = vld [vmem:[#allocation4 + $0x88] sm:$0xf]
    %v259 = vld [vmem:[#allocation4 + $0x8c] sm:$0xf]
    %v260 = vld [vmem:[#allocation4 + $0x90] sm:$0xf]
    %v261 = vld [vmem:[#allocation4 + $0x94] sm:$0xf]
    %v262 = vld [vmem:[#allocation4 + $0x98] sm:$0xf]
    %v263 = vld [vmem:[#allocation4 + $0x9c] sm:$0xf]
    %v264 = vld [vmem:[#allocation4 + $0xa0] sm:$0xf]
    %v265 = vld [vmem:[#allocation4 + $0xa4] sm:$0xf]
    %v266 = vld [vmem:[#allocation4 + $0xa8] sm:$0xf]
    %v267 = vld [vmem:[#allocation4 + $0xac] sm:$0xf]
    %v268 = vld [vmem:[#allocation4 + $0xb0] sm:$0xf]
    %v269 = vld [vmem:[#allocation4 + $0xb4] sm:$0xf]
    %v270 = vld [vmem:[#allocation4 + $0xb8] sm:$0xf]
    %v271 = vld [vmem:[#allocation4 + $0xbc] sm:$0xf]
    %v272 = vld [vmem:[#allocation4 + $0xc0] sm:$0xf]
    %v273 = vld [vmem:[#allocation4 + $0xc4] sm:$0xf]
    %v274 = vld [vmem:[#allocation4 + $0xc8] sm:$0xf]
    %v275 = vld [vmem:[#allocation4 + $0xcc] sm:$0xf]
    %v276 = vld [vmem:[#allocation4 + $0xd0] sm:$0xf]
    %v277 = vld [vmem:[#allocation4 + $0xd4] sm:$0xf]
    %v278 = vld [vmem:[#allocation4 + $0xd8] sm:$0xf]
    %v279 = vld [vmem:[#allocation4 + $0xdc] sm:$0xf]
    %v280 = vld [vmem:[#allocation4 + $0xe0] sm:$0xf]
    %v281 = vld [vmem:[#allocation4 + $0xe4] sm:$0xf]
    %v282 = vld [vmem:[#allocation4 + $0xe8] sm:$0xf]
    %v283 = vld [vmem:[#allocation4 + $0xec] sm:$0xf]
    %v284 = vld [vmem:[#allocation4 + $0xf0] sm:$0xf]
    %v285 = vld [vmem:[#allocation4 + $0xf4] sm:$0xf]
    %v286 = vld [vmem:[#allocation4 + $0xf8] sm:$0xf]
    %v287 = vld [vmem:[#allocation4 + $0xfc] sm:$0xf]
    %v288 = vld [vmem:[%s4] sm:$0x1]
    %v290 = vlaneseq
    %v291 = vshrl.u32 %v290, 7
    %v292 = vsub.s32 0, %v291
    %v293 = vrot.slane %v288, %v292
    %v359 = vunpack.c.l.b16 %v224
    %v360 = vunpack.c.l.b16 %v225
    %v361 = vunpack.c.l.b16 %v226
    %v362 = vunpack.c.l.b16 %v227
    %v363 = vunpack.c.l.b16 %v228
    %v364 = vunpack.c.l.b16 %v229
    %v365 = vunpack.c.l.b16 %v230
    %v366 = vunpack.c.l.b16 %v231
    %v367 = vunpack.c.l.b16 %v232
    %v368 = vunpack.c.l.b16 %v233
    %v369 = vunpack.c.l.b16 %v234
    %v370 = vunpack.c.l.b16 %v235
    %v371 = vunpack.c.l.b16 %v236
    %v372 = vunpack.c.l.b16 %v237
    %v373 = vunpack.c.l.b16 %v238
    %v374 = vunpack.c.l.b16 %v239
    %v375 = vunpack.c.l.b16 %v240
    %v376 = vunpack.c.l.b16 %v241
    %v377 = vunpack.c.l.b16 %v242
    %v378 = vunpack.c.l.b16 %v243
    %v379 = vunpack.c.l.b16 %v244
    %v380 = vunpack.c.l.b16 %v245
    %v381 = vunpack.c.l.b16 %v246
    %v382 = vunpack.c.l.b16 %v247
    %v383 = vunpack.c.l.b16 %v248
    %v384 = vunpack.c.l.b16 %v249
    %v385 = vunpack.c.l.b16 %v250
    %v386 = vunpack.c.l.b16 %v251
    %v387 = vunpack.c.l.b16 %v252
    %v388 = vunpack.c.l.b16 %v253
    %v389 = vunpack.c.l.b16 %v254
    %v390 = vunpack.c.l.b16 %v255
    %v391 = vunpack.c.l.b16 %v256
    %v392 = vunpack.c.l.b16 %v257
    %v393 = vunpack.c.l.b16 %v258
    %v394 = vunpack.c.l.b16 %v259
    %v395 = vunpack.c.l.b16 %v260
    %v396 = vunpack.c.l.b16 %v261
    %v397 = vunpack.c.l.b16 %v262
    %v398 = vunpack.c.l.b16 %v263
    %v399 = vunpack.c.l.b16 %v264
    %v400 = vunpack.c.l.b16 %v265
    %v401 = vunpack.c.l.b16 %v266
    %v402 = vunpack.c.l.b16 %v267
    %v403 = vunpack.c.l.b16 %v268
    %v404 = vunpack.c.l.b16 %v269
    %v405 = vunpack.c.l.b16 %v270
    %v406 = vunpack.c.l.b16 %v271
    %v407 = vunpack.c.l.b16 %v272
    %v408 = vunpack.c.l.b16 %v273
    %v409 = vunpack.c.l.b16 %v274
    %v410 = vunpack.c.l.b16 %v275
    %v411 = vunpack.c.l.b16 %v276
    %v412 = vunpack.c.l.b16 %v277
    %v413 = vunpack.c.l.b16 %v278
    %v414 = vunpack.c.l.b16 %v279
    %v415 = vunpack.c.l.b16 %v280
    %v416 = vunpack.c.l.b16 %v281
    %v417 = vunpack.c.l.b16 %v282
    %v418 = vunpack.c.l.b16 %v283
    %v419 = vunpack.c.l.b16 %v284
    %v420 = vunpack.c.l.b16 %v285
    %v421 = vunpack.c.l.b16 %v286
    %v422 = vunpack.c.l.b16 %v287
    %v423 = vpack.c.b16 %v360, %v359
    %v424 = vpack.c.b16 %v362, %v361
    %v425 = vpack.c.b16 %v364, %v363
    %v426 = vpack.c.b16 %v366, %v365
    %v427 = vpack.c.b16 %v368, %v367
    %v428 = vpack.c.b16 %v370, %v369
    %v429 = vpack.c.b16 %v372, %v371
    %v430 = vpack.c.b16 %v374, %v373
    %v431 = vpack.c.b16 %v376, %v375
    %v432 = vpack.c.b16 %v378, %v377
    %v433 = vpack.c.b16 %v380, %v379
    %v434 = vpack.c.b16 %v382, %v381
    %v435 = vpack.c.b16 %v384, %v383
    %v436 = vpack.c.b16 %v386, %v385
    %v437 = vpack.c.b16 %v388, %v387
    %v438 = vpack.c.b16 %v390, %v389
    %v439 = vpack.c.b16 %v392, %v391
    %v440 = vpack.c.b16 %v394, %v393
    %v441 = vpack.c.b16 %v396, %v395
    %v442 = vpack.c.b16 %v398, %v397
    %v443 = vpack.c.b16 %v400, %v399
    %v444 = vpack.c.b16 %v402, %v401
    %v445 = vpack.c.b16 %v404, %v403
    %v446 = vpack.c.b16 %v406, %v405
    %v447 = vpack.c.b16 %v408, %v407
    %v448 = vpack.c.b16 %v410, %v409
    %v449 = vpack.c.b16 %v412, %v411
    %v450 = vpack.c.b16 %v414, %v413
    %v451 = vpack.c.b16 %v416, %v415
    %v452 = vpack.c.b16 %v418, %v417
    %v453 = vpack.c.b16 %v420, %v419
    %v454 = vpack.c.b16 %v422, %v421
    %487 = vmatprep.subr.bf16.mxu0 0
    %488 = vmatpush1.bf16.msra.mxu0 %v423
    %489 = vmatprep.subr.bf16.mxu0 0
    %490 = vmatpush1.bf16.msra.mxu0 %v424
    %491 = vmatprep.subr.bf16.mxu0 0
    %492 = vmatpush1.bf16.msra.mxu0 %v425
    %493 = vmatprep.subr.bf16.mxu0 0
    %494 = vmatpush1.bf16.msra.mxu0 %v426
    %495 = vmatprep.subr.bf16.mxu0 0
    %496 = vmatpush1.bf16.msra.mxu0 %v427
    %497 = vmatprep.subr.bf16.mxu0 0
    %498 = vmatpush1.bf16.msra.mxu0 %v428
    %499 = vmatprep.subr.bf16.mxu0 0
    %500 = vmatpush1.bf16.msra.mxu0 %v429
    %501 = vmatprep.subr.bf16.mxu0 0
    %502 = vmatpush1.bf16.msra.mxu0 %v430
    %503 = vmatprep.subr.bf16.mxu0 0
    %504 = vmatpush1.bf16.msra.mxu0 %v431
    %505 = vmatprep.subr.bf16.mxu0 0
    %506 = vmatpush1.bf16.msra.mxu0 %v432
    %507 = vmatprep.subr.bf16.mxu0 0
    %508 = vmatpush1.bf16.msra.mxu0 %v433
    %509 = vmatprep.subr.bf16.mxu0 0
    %510 = vmatpush1.bf16.msra.mxu0 %v434
    %511 = vmatprep.subr.bf16.mxu0 0
    %512 = vmatpush1.bf16.msra.mxu0 %v435
    %513 = vmatprep.subr.bf16.mxu0 0
    %514 = vmatpush1.bf16.msra.mxu0 %v436
    %515 = vmatprep.subr.bf16.mxu0 0
    %516 = vmatpush1.bf16.msra.mxu0 %v437
    %517 = vmatprep.subr.bf16.mxu0 0
    %518 = vmatpush1.bf16.msra.mxu0 %v438
    %519 = vmatprep.mubr.bf16.mxu0 %v221
    %520 = vmatmul.mubr.bf16.gmra.mrb[0].mxu0 %v220
    %v521 = vpop.f32.mrb[0].mxu0
    %v522 = vadd.f32 %v293, %v521
    %v523 = vpop.f32.mrb[0].mxu0
    %v524 = vpop.f32.mrb[0].mxu0
    %v525 = vadd.f32 %v293, %v524
    %v526 = vpop.f32.mrb[0].mxu0
    %527 = vdwg.mxu0
    %528 = vmatprep.subr.bf16.mxu0 0
    %529 = vmatpush1.bf16.msra.mxu0 %v439
    %530 = vmatprep.subr.bf16.mxu0 0
    %531 = vmatpush1.bf16.msra.mxu0 %v440
    %532 = vmatprep.subr.bf16.mxu0 0
    %533 = vmatpush1.bf16.msra.mxu0 %v441
    %534 = vmatprep.subr.bf16.mxu0 0
    %535 = vmatpush1.bf16.msra.mxu0 %v442
    %536 = vmatprep.subr.bf16.mxu0 0
    %537 = vmatpush1.bf16.msra.mxu0 %v443
    %538 = vmatprep.subr.bf16.mxu0 0
    %539 = vmatpush1.bf16.msra.mxu0 %v444
    %540 = vmatprep.subr.bf16.mxu0 0
    %541 = vmatpush1.bf16.msra.mxu0 %v445
    %542 = vmatprep.subr.bf16.mxu0 0
    %543 = vmatpush1.bf16.msra.mxu0 %v446
    %544 = vmatprep.subr.bf16.mxu0 0
    %545 = vmatpush1.bf16.msra.mxu0 %v447
    %546 = vmatprep.subr.bf16.mxu0 0
    %547 = vmatpush1.bf16.msra.mxu0 %v448
    %548 = vmatprep.subr.bf16.mxu0 0
    %549 = vmatpush1.bf16.msra.mxu0 %v449
    %550 = vmatprep.subr.bf16.mxu0 0
    %551 = vmatpush1.bf16.msra.mxu0 %v450
    %552 = vmatprep.subr.bf16.mxu0 0
    %553 = vmatpush1.bf16.msra.mxu0 %v451
    %554 = vmatprep.subr.bf16.mxu0 0
    %555 = vmatpush1.bf16.msra.mxu0 %v452
    %556 = vmatprep.subr.bf16.mxu0 0
    %557 = vmatpush1.bf16.msra.mxu0 %v453
    %558 = vmatprep.subr.bf16.mxu0 0
    %559 = vmatpush1.bf16.msra.mxu0 %v454
    %560 = vmatprep.mubr.bf16.mxu0 %v223
    %561 = vmatmul.mubr.bf16.gmra.mrb[0].mxu0 %v222
    %v562 = vpop.f32.mrb[0].mxu0
    %v563 = vadd.f32 %v522, %v562
    %v564 = vpop.f32.mrb[0].mxu0
    %v565 = vpop.f32.mrb[0].mxu0
    %v566 = vadd.f32 %v525, %v565
    %v567 = vpop.f32.mrb[0].mxu0
    %568 = vdwg.mxu0
    %569 = vst [vmem:[%s5] sm:$0xff] %v563
    %570 = vst [vmem:[%s5 + $0x8] sm:$0xff] %v566
    // Predicated region
    $region30: #{neural_network_forward.1} parent=1 // pred_check
      _
    $region31: #{neural_network_forward.1} parent=1 // pred_check_branch
      %572 = sbr.rel (0) target = $region33
    $region32: #{neural_network_forward.1} parent=1 // pred_region
      _
    $region33: #{neural_network_forward.1} parent=1 // pred_fallthru
      _
    // Predicated region
    $region34: #{neural_network_forward.1} parent=1 // pred_check
      _
    $region35: #{neural_network_forward.1} parent=1 // pred_check_branch
      %574 = sbr.rel (0) target = $region37
    $region36: #{neural_network_forward.1} parent=1 // pred_region
      _
    $region37: #{neural_network_forward.1} parent=1 // pred_fallthru
      _
    %575 = vsyncpa [#allocation3], 1
    %576 = vsyncpa [#allocation5], 1

</llo_original>
